<compile_context>
chip_gen: v7x
topology: tpu7x:2x2x1
jax: 0.10.0
libtpu: 0.0.40
codegen_flags: <defaults>
</compile_context>

<pallas_src>
import math

import jax
import jax.numpy as jnp
from jax.experimental import pallas as pl
from jax.experimental.pallas import tpu as pltpu

# ---- constants implied by the PyTorch module (small synthetic sizes) ----
MAX_POSITIONS = 32      # pos-id table in the module is arange(2, MAX_POSITIONS)
XYZ_ONE_FRAME = 16      # landmarks per frame
TRIM_TO_SEQ   = 8       # max frames fed to the model
HIDDEN        = 32      # hidden size of the synthetic inner _model
MLP_DIM       = 64
NUM_CLASSES   = 16
NOSE_IDX      = 0       # center_nose(): subtract landmark 0 of each frame
FEAT_DIM      = XYZ_ONE_FRAME * 3   # 48
LANES         = 128
S_MAX         = TRIM_TO_SEQ + 1     # CLS row + up to TRIM_TO_SEQ frames

# Row offsets inside the single packed slab (all multiples of 8).
_R_WIN = 0                        # w_in (nose-centering folded)      (48, 32)
_R_WQ  = _R_WIN + FEAT_DIM        # wq * 1/sqrt(H)                    (32, 32)
_R_WK  = _R_WQ + HIDDEN           # wk                                (32, 32)
_R_WV  = _R_WK + HIDDEN           # wv                                (32, 32)
_R_WO  = _R_WV + HIDDEN           # wo                                (32, 32)
_R_W1  = _R_WO + HIDDEN           # w1                                (32, 64)
_R_W2  = _R_W1 + HIDDEN           # w2                                (64, 32)
_R_WH  = _R_W2 + MLP_DIM          # head (LN2 gain folded)            (32, 128)
_R_VEC = _R_WH + HIDDEN           # g1, be1, b1, b2, bh_eff rows      (8, 128)
_R_ADD = _R_VEC + 8               # [cls+pos[1]; b_in+pos[2:10]]      (16, 128)
_R_END = _R_ADD + 16              # 328 rows total (~164 KiB f32)


# --------------------------- Pallas kernel ---------------------------

def _fused_model_kernel(seq_ref, feat_ref, slab_ref, out_ref):
    """Fused forward.

    seq : SMEM (1,1) int32 -- true sequence length (CLS + real frames).
    feat: (S_MAX, 48)      -- row 0 is an all-zero CLS placeholder, rows
                              1..t_eff are raw trimmed frames, rest zero
                              (nose-centering is folded into the weights).
    slab: (328, 128)       -- merged weight/bias/additive slab (_R_* offsets).
    out : (1, 128)         -- head logits, zero-padded past NUM_CLASSES.
    """
    H = HIDDEN
    seq = seq_ref[0, 0]

    # frame projection (+ b_in / cls / pos adds, all precomputed in the slab)
    h0 = (jnp.dot(feat_ref[...], slab_ref[_R_WIN:_R_WIN + FEAT_DIM, 0:H],
                  preferred_element_type=jnp.float32)
          + slab_ref[_R_ADD:_R_ADD + S_MAX, 0:H])

    # Q only for the CLS row (only the CLS output is used); K, V for all rows.
    # Three lane-0-aligned matmuls -> no lane-offset result slices.
    q_cls = jnp.dot(h0[0:1, :], slab_ref[_R_WQ:_R_WQ + H, 0:H],
                    preferred_element_type=jnp.float32)   # 1/sqrt(H) pre-folded
    k = jnp.dot(h0, slab_ref[_R_WK:_R_WK + H, 0:H],
                preferred_element_type=jnp.float32)
    v = jnp.dot(h0, slab_ref[_R_WV:_R_WV + H, 0:H],
                preferred_element_type=jnp.float32)

    # single-head attention for the CLS row, masking padded key columns
    scores = jax.lax.dot_general(q_cls, k, (((1,), (1,)), ((), ())),
                                 preferred_element_type=jnp.float32)  # (1, S_MAX)
    col = jax.lax.broadcasted_iota(jnp.int32, scores.shape, 1)
    scores = jnp.where(col < seq, scores, -1e30)
    p = jnp.exp(scores - jnp.max(scores, axis=-1, keepdims=True))
    attn = p / jnp.sum(p, axis=-1, keepdims=True)          # exact divide
    ctx = jnp.dot(attn, v, preferred_element_type=jnp.float32)
    h1 = h0[0:1, :] + jnp.dot(ctx, slab_ref[_R_WO:_R_WO + H, 0:H],
                              preferred_element_type=jnp.float32)

    # layer norm 1 (statistics over the real 32 lanes only)
    mu = jnp.mean(h1, axis=-1, keepdims=True)
    var = jnp.mean((h1 - mu) ** 2, axis=-1, keepdims=True)
    h1n = ((h1 - mu) * jax.lax.rsqrt(var + 1e-5)
           * slab_ref[_R_VEC + 0:_R_VEC + 1, 0:H]
           + slab_ref[_R_VEC + 1:_R_VEC + 2, 0:H])

    # MLP
    m = jnp.maximum(
        jnp.dot(h1n, slab_ref[_R_W1:_R_W1 + H, 0:MLP_DIM],
                preferred_element_type=jnp.float32)
        + slab_ref[_R_VEC + 2:_R_VEC + 3, 0:MLP_DIM],
        0.0)
    m = (jnp.dot(m, slab_ref[_R_W2:_R_W2 + MLP_DIM, 0:H],
                 preferred_element_type=jnp.float32)
         + slab_ref[_R_VEC + 3:_R_VEC + 4, 0:H])
    h2 = h1n + m

    # layer norm 2: gain folded into head weights, bias folded into head bias
    mu2 = jnp.mean(h2, axis=-1, keepdims=True)
    var2 = jnp.mean((h2 - mu2) ** 2, axis=-1, keepdims=True)
    h2n = (h2 - mu2) * jax.lax.rsqrt(var2 + 1e-5)

    # classification head; 128-lane padded result -> unmasked store
    out_ref[...] = (jnp.dot(h2n, slab_ref[_R_WH:_R_WH + H, :],
                            preferred_element_type=jnp.float32)
                    + slab_ref[_R_VEC + 4:_R_VEC + 5, :])


# --------------------------- parameters ---------------------------

def init_params(key):
    """Raw (un-packed) synthetic parameters of the inner `_model`."""
    ks = jax.random.split(key, 16)
    feat_dim = FEAT_DIM

    def lin(k, i, o, scale=0.05):
        return jax.random.normal(k, (i, o), jnp.float32) * scale

    def vec(k, n, scale=0.05):
        return jax.random.normal(k, (1, n), jnp.float32) * scale

    return dict(
        w_in=lin(ks[0], feat_dim, HIDDEN),
        b_in=vec(ks[10], HIDDEN),
        cls=vec(ks[1], HIDDEN),
        pos=jax.random.normal(ks[2], (MAX_POSITIONS, HIDDEN), jnp.float32) * 0.05,
        wq=lin(ks[3], HIDDEN, HIDDEN),
        wk=lin(ks[4], HIDDEN, HIDDEN),
        wv=lin(ks[5], HIDDEN, HIDDEN),
        wo=lin(ks[6], HIDDEN, HIDDEN),
        g1=1.0 + vec(ks[11], HIDDEN, 0.1),
        be1=vec(ks[12], HIDDEN),
        w1=lin(ks[7], HIDDEN, MLP_DIM),
        b1=vec(ks[13], MLP_DIM),
        w2=lin(ks[8], MLP_DIM, HIDDEN),
        b2=vec(ks[14], HIDDEN),
        g2=1.0 + vec(ks[15], HIDDEN, 0.1),
        be2=vec(ks[9], HIDDEN) * 0.5,
        wh=lin(ks[9], HIDDEN, NUM_CLASSES),
        bh=vec(ks[0], NUM_CLASSES),
    )


def pack_params(params):
    """Fold + pack ALL parameters into one DMA-friendly (328,128) slab."""
    H, F = HIDDEN, FEAT_DIM

    # center_nose folded into w_in:  centered = x @ (I - E),  E[j%3, j] = 1
    j = jnp.arange(F)
    E = jnp.zeros((F, F), jnp.float32).at[3 * NOSE_IDX + (j % 3), j].set(1.0)
    w_in_c = (jnp.eye(F, dtype=jnp.float32) - E) @ params["w_in"]

    # fold 1/sqrt(H) score scaling into the Q projection
    wq_scaled = params["wq"] * jnp.float32(1.0 / math.sqrt(H))

    # fold LN2 gain/bias into the head
    wh_eff = params["wh"] * params["g2"].reshape(H, 1)
    bh_eff = params["bh"] + params["be2"] @ params["wh"]

    # pos_ids = [1, 2, ..., cut_to+1]  ->  row 0: cls+pos[1], row i: b_in+pos[1+i]
    add_full = jnp.concatenate(
        [params["cls"] + params["pos"][1:2],
         params["b_in"] + params["pos"][2:2 + TRIM_TO_SEQ]], axis=0)   # (9, 32)

    M = jnp.zeros((_R_END, LANES), jnp.float32)
    M = M.at[_R_WIN:_R_WIN + F, 0:H].set(w_in_c)
    M = M.at[_R_WQ:_R_WQ + H, 0:H].set(wq_scaled)
    M = M.at[_R_WK:_R_WK + H, 0:H].set(params["wk"])
    M = M.at[_R_WV:_R_WV + H, 0:H].set(params["wv"])
    M = M.at[_R_WO:_R_WO + H, 0:H].set(params["wo"])
    M = M.at[_R_W1:_R_W1 + H, 0:MLP_DIM].set(params["w1"])
    M = M.at[_R_W2:_R_W2 + MLP_DIM, 0:H].set(params["w2"])
    M = M.at[_R_WH:_R_WH + H, 0:NUM_CLASSES].set(wh_eff)
    M = M.at[_R_VEC + 0, 0:H].set(params["g1"][0])
    M = M.at[_R_VEC + 1, 0:H].set(params["be1"][0])
    M = M.at[_R_VEC + 2, 0:MLP_DIM].set(params["b1"][0])
    M = M.at[_R_VEC + 3, 0:H].set(params["b2"][0])
    M = M.at[_R_VEC + 4, 0:NUM_CLASSES].set(bh_eff[0])
    M = M.at[_R_ADD:_R_ADD + S_MAX, 0:H].set(add_full)
    return M


# --------------------------- forward wrapper ---------------------------

def prepare_inputs(inputs):
    """Trim/flatten/pad to the FIXED kernel shapes (cheap, off the hot path).

    Returns a (S_MAX, 48) feature buffer (row 0 = CLS placeholder, rows
    1..t_eff = frames, rest zero) and the (1,1) int32 sequence length.
    """
    n_frames = inputs.shape[0]
    t_eff = min(n_frames, TRIM_TO_SEQ)              # static clip (shape-derived)
    feat = inputs[:t_eff].reshape(t_eff, FEAT_DIM).astype(jnp.float32)
    feat_pad = jnp.zeros((S_MAX, FEAT_DIM), jnp.float32)
    feat_pad = jax.lax.dynamic_update_slice(feat_pad, feat, (1, 0))
    seq_len = jnp.full((1, 1), t_eff + 1, jnp.int32)
    return feat_pad, seq_len


@jax.jit
def forward(feat_pad, seq_len, slab):
    """Fixed-shape kernel call -- compiled exactly once for any n_frames."""
    out = pl.pallas_call(
        _fused_model_kernel,
        out_shape=jax.ShapeDtypeStruct((1, LANES), jnp.float32),
        in_specs=[pl.BlockSpec(memory_space=pltpu.MemorySpace.SMEM),   # seq_len
                  pl.BlockSpec(memory_space=pltpu.MemorySpace.VMEM),   # features
                  pl.BlockSpec(memory_space=pltpu.MemorySpace.VMEM)],  # slab
        out_specs=pl.BlockSpec(memory_space=pltpu.MemorySpace.VMEM),
    )(seq_len, feat_pad, slab)
    # outputs.reshape(-1)   (consumers that accept 128-lane padding can skip this)
    return out[0, :NUM_CLASSES]


# --------------------------- pure-JAX reference ---------------------------

def reference_forward(inputs, params):
    """Unfused, unfolded reference of the synthetic module (for verification)."""
    n = inputs.shape[0]
    centered = inputs - inputs[:, NOSE_IDX:NOSE_IDX + 1, :]
    flat = centered.reshape(1, -1)[:, :TRIM_TO_SEQ * FEAT_DIM]
    t_eff = min(n, TRIM_TO_SEQ)
    feat = flat.reshape(t_eff, FEAT_DIM)
    proj = feat @ params["w_in"] + params["b_in"]
    h = jnp.concatenate([params["cls"], proj], axis=0)
    pos_ids = jnp.concatenate(
        [jnp.array([1], jnp.int32), jnp.arange(2, 2 + t_eff, dtype=jnp.int32)])
    h0 = h + params["pos"][pos_ids]
    q = h0 @ params["wq"]; k = h0 @ params["wk"]; v = h0 @ params["wv"]
    a = jax.nn.softmax((q @ k.T) / math.sqrt(HIDDEN), axis=-1)
    h1 = h0 + (a @ v) @ params["wo"]
    mu = h1.mean(-1, keepdims=True)
    var = ((h1 - mu) ** 2).mean(-1, keepdims=True)
    h1n = (h1 - mu) * jax.lax.rsqrt(var + 1e-5) * params["g1"] + params["be1"]
    m = jnp.maximum(h1n @ params["w1"] + params["b1"], 0.0)
    h2 = h1n + m @ params["w2"] + params["b2"]
    mu2 = h2.mean(-1, keepdims=True)
    var2 = ((h2 - mu2) ** 2).mean(-1, keepdims=True)
    h2n = (h2 - mu2) * jax.lax.rsqrt(var2 + 1e-5) * params["g2"] + params["be2"]
    return (h2n[0:1] @ params["wh"] + params["bh"]).reshape(-1)


if __name__ == "__main__":
    key = jax.random.PRNGKey(0)
    params = init_params(jax.random.PRNGKey(1))
    slab = pack_params(params)            # one-time packing/folding (off the hot path)

    # case 1: n_frames > TRIM_TO_SEQ (trim path)
    inputs_long = jax.random.normal(key, (10, XYZ_ONE_FRAME, 3), dtype=jnp.float32)
    feat_pad, seq_len = prepare_inputs(inputs_long)
    out_long = jax.block_until_ready(forward(feat_pad, seq_len, slab))

    # case 2: n_frames < TRIM_TO_SEQ (padding + attention-mask path); same
    # fixed-shape kernel, so no recompile of `forward`.
    inputs_short = inputs_long[:5]
    feat_pad_s, seq_len_s = prepare_inputs(inputs_short)
    out_short = jax.block_until_ready(forward(feat_pad_s, seq_len_s, slab))

    for out, inp in ((out_long, inputs_long), (out_short, inputs_short)):
        assert out.shape == (NUM_CLASSES,)
        assert bool(jnp.all(jnp.isfinite(out)))
        ref = reference_forward(inp, params)
        assert bool(jnp.allclose(out, ref, atol=1e-3, rtol=1e-3)), (out, ref)

    print("KERNEL_OK")
</pallas_src>

<mosaic_0001>
module attributes {stable_mosaic.version = 11 : i64} {
  func.func @_fused_model_kernel(%arg0: memref<1x1xi32, #tpu.memory_space<smem>>, %arg1: memref<9x48xf32, #tpu.memory_space<vmem>>, %arg2: memref<328x128xf32, #tpu.memory_space<vmem>>, %arg3: memref<1x128xf32, #tpu.memory_space<vmem>>) attributes {dimension_semantics = [], scalar_prefetch = 0 : i64, scratch_operands = 0 : i64, tpu.core_type = #tpu.core_type<tc>} {
    %c0 = arith.constant 0 : index
    %c0_0 = arith.constant 0 : index
    %0 = memref.load %arg0[%c0, %c0_0] : memref<1x1xi32, #tpu.memory_space<smem>>
    %c0_1 = arith.constant 0 : index
    %c0_2 = arith.constant 0 : index
    %1 = vector.load %arg1[%c0_1, %c0_2] : memref<9x48xf32, #tpu.memory_space<vmem>>, vector<9x48xf32>
    %c0_3 = arith.constant 0 : index
    %c0_4 = arith.constant 0 : index
    %2 = vector.load %arg2[%c0_3, %c0_4] : memref<328x128xf32, #tpu.memory_space<vmem>>, vector<48x32xf32>
    %cst = arith.constant dense<0.000000e+00> : vector<9x32xf32>
    %3 = tpu.matmul %1, %2, %cst {dimension_numbers = #tpu.dot_dimension_numbers<[1], [0], [0], [1], [0, 0, 1, 1], [], []>} : vector<9x48xf32>, vector<48x32xf32>, vector<9x32xf32> -> vector<9x32xf32>
    %c312 = arith.constant 312 : index
    %c0_5 = arith.constant 0 : index
    %4 = vector.load %arg2[%c312, %c0_5] : memref<328x128xf32, #tpu.memory_space<vmem>>, vector<9x32xf32>
    %5 = arith.addf %3, %4 : vector<9x32xf32>
    %6 = vector.extract_strided_slice %5 {offsets = [0, 0], sizes = [1, 32], strides = [1, 1]} : vector<9x32xf32> to vector<1x32xf32>
    %c48 = arith.constant 48 : index
    %c0_6 = arith.constant 0 : index
    %7 = vector.load %arg2[%c48, %c0_6] : memref<328x128xf32, #tpu.memory_space<vmem>>, vector<32x32xf32>
    %cst_7 = arith.constant dense<0.000000e+00> : vector<1x32xf32>
    %8 = tpu.matmul %6, %7, %cst_7 {dimension_numbers = #tpu.dot_dimension_numbers<[1], [0], [0], [1], [0, 0, 1, 1], [], []>} : vector<1x32xf32>, vector<32x32xf32>, vector<1x32xf32> -> vector<1x32xf32>
    %c80 = arith.constant 80 : index
    %c0_8 = arith.constant 0 : index
    %9 = vector.load %arg2[%c80, %c0_8] : memref<328x128xf32, #tpu.memory_space<vmem>>, vector<32x32xf32>
    %cst_9 = arith.constant dense<0.000000e+00> : vector<9x32xf32>
    %10 = tpu.matmul %5, %9, %cst_9 {dimension_numbers = #tpu.dot_dimension_numbers<[1], [0], [0], [1], [0, 0, 1, 1], [], []>} : vector<9x32xf32>, vector<32x32xf32>, vector<9x32xf32> -> vector<9x32xf32>
    %c112 = arith.constant 112 : index
    %c0_10 = arith.constant 0 : index
    %11 = vector.load %arg2[%c112, %c0_10] : memref<328x128xf32, #tpu.memory_space<vmem>>, vector<32x32xf32>
    %cst_11 = arith.constant dense<0.000000e+00> : vector<9x32xf32>
    %12 = tpu.matmul %5, %11, %cst_11 {dimension_numbers = #tpu.dot_dimension_numbers<[1], [0], [0], [1], [0, 0, 1, 1], [], []>} : vector<9x32xf32>, vector<32x32xf32>, vector<9x32xf32> -> vector<9x32xf32>
    %cst_12 = arith.constant dense<0.000000e+00> : vector<1x9xf32>
    %13 = tpu.matmul %8, %10, %cst_12 {dimension_numbers = #tpu.dot_dimension_numbers<[1], [1], [0], [0], [0, 0, 1, 0], [], []>} : vector<1x32xf32>, vector<9x32xf32>, vector<1x9xf32> -> vector<1x9xf32>
    %14 = tpu.iota {dimensions = array<i32: 1>} : vector<1x9xi32>
    %15 = vector.broadcast %0 : i32 to vector<1x9xi32>
    %16 = arith.cmpi slt, %14, %15 : vector<1x9xi32>
    %cst_13 = arith.constant -1.000000e+30 : f32
    %17 = vector.broadcast %cst_13 : f32 to vector<1x9xf32>
    %18 = arith.select %16, %13, %17 : vector<1x9xi1>, vector<1x9xf32>
    %cst_14 = arith.constant dense<0xFF800000> : vector<1xf32>
    %19 = vector.multi_reduction <maximumf>, %18, %cst_14 [1] : vector<1x9xf32> to vector<1xf32>
    %20 = vector.shape_cast %19 : vector<1xf32> to vector<1x1xf32>
    %21 = vector.broadcast %20 : vector<1x1xf32> to vector<1x9xf32>
    %22 = arith.subf %18, %21 : vector<1x9xf32>
    %23 = math.exp %22 : vector<1x9xf32>
    %cst_15 = arith.constant dense<0.000000e+00> : vector<1xf32>
    %24 = vector.multi_reduction <add>, %23, %cst_15 [1] : vector<1x9xf32> to vector<1xf32>
    %25 = vector.shape_cast %24 : vector<1xf32> to vector<1x1xf32>
    %26 = vector.broadcast %25 : vector<1x1xf32> to vector<1x9xf32>
    %27 = arith.divf %23, %26 : vector<1x9xf32>
    %cst_16 = arith.constant dense<0.000000e+00> : vector<1x32xf32>
    %28 = tpu.matmul %27, %12, %cst_16 {dimension_numbers = #tpu.dot_dimension_numbers<[1], [0], [0], [1], [0, 0, 1, 1], [], []>} : vector<1x9xf32>, vector<9x32xf32>, vector<1x32xf32> -> vector<1x32xf32>
    %29 = vector.extract_strided_slice %5 {offsets = [0, 0], sizes = [1, 32], strides = [1, 1]} : vector<9x32xf32> to vector<1x32xf32>
    %c144 = arith.constant 144 : index
    %c0_17 = arith.constant 0 : index
    %30 = vector.load %arg2[%c144, %c0_17] : memref<328x128xf32, #tpu.memory_space<vmem>>, vector<32x32xf32>
    %cst_18 = arith.constant dense<0.000000e+00> : vector<1x32xf32>
    %31 = tpu.matmul %28, %30, %cst_18 {dimension_numbers = #tpu.dot_dimension_numbers<[1], [0], [0], [1], [0, 0, 1, 1], [], []>} : vector<1x32xf32>, vector<32x32xf32>, vector<1x32xf32> -> vector<1x32xf32>
    %32 = arith.addf %29, %31 : vector<1x32xf32>
    %cst_19 = arith.constant dense<0.000000e+00> : vector<1xf32>
    %33 = vector.multi_reduction <add>, %32, %cst_19 [1] : vector<1x32xf32> to vector<1xf32>
    %34 = vector.shape_cast %33 : vector<1xf32> to vector<1x1xf32>
    %cst_20 = arith.constant 3.200000e+01 : f32
    %35 = vector.broadcast %cst_20 : f32 to vector<1x1xf32>
    %36 = arith.divf %34, %35 : vector<1x1xf32>
    %37 = vector.broadcast %36 : vector<1x1xf32> to vector<1x32xf32>
    %38 = arith.subf %32, %37 : vector<1x32xf32>
    %39 = arith.mulf %38, %38 : vector<1x32xf32>
    %cst_21 = arith.constant dense<0.000000e+00> : vector<1xf32>
    %40 = vector.multi_reduction <add>, %39, %cst_21 [1] : vector<1x32xf32> to vector<1xf32>
    %41 = vector.shape_cast %40 : vector<1xf32> to vector<1x1xf32>
    %cst_22 = arith.constant 3.200000e+01 : f32
    %42 = vector.broadcast %cst_22 : f32 to vector<1x1xf32>
    %43 = arith.divf %41, %42 : vector<1x1xf32>
    %44 = vector.broadcast %36 : vector<1x1xf32> to vector<1x32xf32>
    %45 = arith.subf %32, %44 : vector<1x32xf32>
    %cst_23 = arith.constant 9.99999974E-6 : f32
    %46 = vector.broadcast %cst_23 : f32 to vector<1x1xf32>
    %47 = arith.addf %43, %46 : vector<1x1xf32>
    %48 = math.rsqrt %47 : vector<1x1xf32>
    %49 = vector.broadcast %48 : vector<1x1xf32> to vector<1x32xf32>
    %50 = arith.mulf %45, %49 : vector<1x32xf32>
    %c304 = arith.constant 304 : index
    %c0_24 = arith.constant 0 : index
    %51 = vector.load %arg2[%c304, %c0_24] : memref<328x128xf32, #tpu.memory_space<vmem>>, vector<1x32xf32>
    %52 = arith.mulf %50, %51 : vector<1x32xf32>
    %c305 = arith.constant 305 : index
    %c0_25 = arith.constant 0 : index
    %53 = vector.load %arg2[%c305, %c0_25] : memref<328x128xf32, #tpu.memory_space<vmem>>, vector<1x32xf32>
    %54 = arith.addf %52, %53 : vector<1x32xf32>
    %c176 = arith.constant 176 : index
    %c0_26 = arith.constant 0 : index
    %55 = vector.load %arg2[%c176, %c0_26] : memref<328x128xf32, #tpu.memory_space<vmem>>, vector<32x64xf32>
    %cst_27 = arith.constant dense<0.000000e+00> : vector<1x64xf32>
    %56 = tpu.matmul %54, %55, %cst_27 {dimension_numbers = #tpu.dot_dimension_numbers<[1], [0], [0], [1], [0, 0, 1, 1], [], []>} : vector<1x32xf32>, vector<32x64xf32>, vector<1x64xf32> -> vector<1x64xf32>
    %c306 = arith.constant 306 : index
    %c0_28 = arith.constant 0 : index
    %57 = vector.load %arg2[%c306, %c0_28] : memref<328x128xf32, #tpu.memory_space<vmem>>, vector<1x64xf32>
    %58 = arith.addf %56, %57 : vector<1x64xf32>
    %cst_29 = arith.constant 0.000000e+00 : f32
    %59 = vector.broadcast %cst_29 : f32 to vector<1x64xf32>
    %60 = arith.maximumf %58, %59 : vector<1x64xf32>
    %c208 = arith.constant 208 : index
    %c0_30 = arith.constant 0 : index
    %61 = vector.load %arg2[%c208, %c0_30] : memref<328x128xf32, #tpu.memory_space<vmem>>, vector<64x32xf32>
    %cst_31 = arith.constant dense<0.000000e+00> : vector<1x32xf32>
    %62 = tpu.matmul %60, %61, %cst_31 {dimension_numbers = #tpu.dot_dimension_numbers<[1], [0], [0], [1], [0, 0, 1, 1], [], []>} : vector<1x64xf32>, vector<64x32xf32>, vector<1x32xf32> -> vector<1x32xf32>
    %c307 = arith.constant 307 : index
    %c0_32 = arith.constant 0 : index
    %63 = vector.load %arg2[%c307, %c0_32] : memref<328x128xf32, #tpu.memory_space<vmem>>, vector<1x32xf32>
    %64 = arith.addf %62, %63 : vector<1x32xf32>
    %65 = arith.addf %54, %64 : vector<1x32xf32>
    %cst_33 = arith.constant dense<0.000000e+00> : vector<1xf32>
    %66 = vector.multi_reduction <add>, %65, %cst_33 [1] : vector<1x32xf32> to vector<1xf32>
    %67 = vector.shape_cast %66 : vector<1xf32> to vector<1x1xf32>
    %cst_34 = arith.constant 3.200000e+01 : f32
    %68 = vector.broadcast %cst_34 : f32 to vector<1x1xf32>
    %69 = arith.divf %67, %68 : vector<1x1xf32>
    %70 = vector.broadcast %69 : vector<1x1xf32> to vector<1x32xf32>
    %71 = arith.subf %65, %70 : vector<1x32xf32>
    %72 = arith.mulf %71, %71 : vector<1x32xf32>
    %cst_35 = arith.constant dense<0.000000e+00> : vector<1xf32>
    %73 = vector.multi_reduction <add>, %72, %cst_35 [1] : vector<1x32xf32> to vector<1xf32>
    %74 = vector.shape_cast %73 : vector<1xf32> to vector<1x1xf32>
    %cst_36 = arith.constant 3.200000e+01 : f32
    %75 = vector.broadcast %cst_36 : f32 to vector<1x1xf32>
    %76 = arith.divf %74, %75 : vector<1x1xf32>
    %77 = vector.broadcast %69 : vector<1x1xf32> to vector<1x32xf32>
    %78 = arith.subf %65, %77 : vector<1x32xf32>
    %cst_37 = arith.constant 9.99999974E-6 : f32
    %79 = vector.broadcast %cst_37 : f32 to vector<1x1xf32>
    %80 = arith.addf %76, %79 : vector<1x1xf32>
    %81 = math.rsqrt %80 : vector<1x1xf32>
    %82 = vector.broadcast %81 : vector<1x1xf32> to vector<1x32xf32>
    %83 = arith.mulf %78, %82 : vector<1x32xf32>
    %c272 = arith.constant 272 : index
    %c0_38 = arith.constant 0 : index
    %84 = vector.load %arg2[%c272, %c0_38] : memref<328x128xf32, #tpu.memory_space<vmem>>, vector<32x128xf32>
    %cst_39 = arith.constant dense<0.000000e+00> : vector<1x128xf32>
    %85 = tpu.matmul %83, %84, %cst_39 {dimension_numbers = #tpu.dot_dimension_numbers<[1], [0], [0], [1], [0, 0, 1, 1], [], []>} : vector<1x32xf32>, vector<32x128xf32>, vector<1x128xf32> -> vector<1x128xf32>
    %c308 = arith.constant 308 : index
    %c0_40 = arith.constant 0 : index
    %86 = vector.load %arg2[%c308, %c0_40] : memref<328x128xf32, #tpu.memory_space<vmem>>, vector<1x128xf32>
    %87 = arith.addf %85, %86 : vector<1x128xf32>
    %c0_41 = arith.constant 0 : index
    %c0_42 = arith.constant 0 : index
    %88 = vector.load %arg3[%c0_41, %c0_42] : memref<1x128xf32, #tpu.memory_space<vmem>>, vector<1x128xf32>
    tpu.vector_store %arg3[%c0_41, %c0_42], %87 {strides = array<i32>} : memref<1x128xf32, #tpu.memory_space<vmem>>, vector<1x128xf32>,
    return
  }
}

</mosaic_0001>

<llo_original>
// kernel: forward.1
$region0: #{forward.1}
  #allocation0 [shape = 'u32[]', space=smem, size = 0x4, offset = 0x4, fixed_abs, tag = 'smem constant byte address 0x4 - core index']
  #allocation1 [shape = 'u32[144,128]{1,0:T(1,128)}', space=vmem, size = 0x12000, scoped, tag = 'internal scratch']
  #allocation2 [shape = 's32[1,1]{1,0:T(1,128)S(6)}', space=smem, size = 0x200, scoped, tag = 'scoped memory for forward.1']
  %s0 = inlined_call_operand.<no memory space> [shape: s32[1,1], index: 0, kind: input, shape index: {}]
  %s1 = inlined_call_operand.hbm [shape: f32[9,48], index: 1, kind: input, shape index: {}]
  %s2 = inlined_call_operand.hbm [shape: f32[328,128], index: 2, kind: input, shape index: {}]
  %s3 = inlined_call_operand.vmem [shape: f32[1,128], index: 3, kind: output, shape index: {}]
  %s4 = sld [smem:[#allocation0]]
  $region30: #{forward.1} parent=0
    _
  %s6 = ssub.s32 1, %s4
  %s7 = scalar_select 0, %s6, %s4
  %8 = sst [smem:[#allocation2]] %s0
  $region1: #{forward.1} parent=0
    #allocation3 [shape = 'u8[8192]{0}', space=vmem, size = 0x2000, scoped, tag = 'input window, operand 1, single buffered']
    #allocation4 [shape = 's32[1]{0}', space=sflag, size = 0x4, scoped, tag = 'scoped memory for forward.1']
    #allocation5 [shape = 'u8[167936]{0}', space=vmem, size = 0x29000, scoped, tag = 'input window, operand 2, single buffered']
    #allocation6 [shape = 's32[1]{0}', space=sflag, size = 0x4, scoped, tag = 'scoped memory for forward.1']
    %9 = vsyncpa [#allocation4], 0
    %10 = vsyncpa [#allocation6], 0
    // Predicated region
    $region2: #{forward.1} parent=1 // pred_check
      _
    $region3: #{forward.1} parent=1 // pred_check_branch
      %12 = sbr.rel (0) target = $region5
    $region4: #{forward.1} parent=1 // pred_region
      _
    $region5: #{forward.1} parent=1 // pred_fallthru
      _
    // Predicated region
    $region6: #{forward.1} parent=1 // pred_check
      _
    $region7: #{forward.1} parent=1 // pred_check_branch
      %14 = sbr.rel (0) target = $region9
    $region8: #{forward.1} parent=1 // pred_region
      %s16 = ssub.s32 256, 256
      %17 = vsyncadd [#allocation4], %s16
      %s18 = sshll.u32 [#allocation3], 4
      %s19 = int_to_ptr.vmem [resolvable:$true] %s18
      %24 = dma.hbm_to_vmem [thread:$0]  %s1, 256, %s19, [#allocation4], 128, 128, 8
    $region9: #{forward.1} parent=1 // pred_fallthru
      _
    // Predicated region
    $region10: #{forward.1} parent=1 // pred_check
      _
    $region11: #{forward.1} parent=1 // pred_check_branch
      %26 = sbr.rel (0) target = $region13
    $region12: #{forward.1} parent=1 // pred_region
      %s28 = ssub.s32 5248, 5248
      %29 = vsyncadd [#allocation6], %s28
      %s30 = sshll.u32 [#allocation5], 4
      %s31 = int_to_ptr.vmem [resolvable:$true] %s30
      %36 = dma.hbm_to_vmem [thread:$0]  %s2, 5248, %s31, [#allocation6], 128, 128, 8
    $region13: #{forward.1} parent=1 // pred_fallthru
      _
    // Predicated region
    $region14: #{forward.1} parent=1 // pred_check
      _
    $region15: #{forward.1} parent=1 // pred_check_branch
      %38 = sbr.rel (0) target = $region17
    $region16: #{forward.1} parent=1 // pred_region
      %39 = dma.done [#allocation4], 256
    $region17: #{forward.1} parent=1 // pred_fallthru
      _
    // Predicated region
    $region18: #{forward.1} parent=1 // pred_check
      _
    $region19: #{forward.1} parent=1 // pred_check_branch
      %41 = sbr.rel (0) target = $region21
    $region20: #{forward.1} parent=1 // pred_region
      %42 = dma.done [#allocation6], 5248
    $region21: #{forward.1} parent=1 // pred_fallthru
      _
    %s43 = sld [smem:[#allocation2]]
    %v44 = vld [vmem:[#allocation3] sm:$0xff]
    %v45 = vld [vmem:[#allocation3 + $0x8] sm:$0x1]
    %v46 = vld [vmem:[#allocation5] sm:$0xff]
    %v47 = vld [vmem:[#allocation5 + $0x8] sm:$0xff]
    %v48 = vld [vmem:[#allocation5 + $0x10] sm:$0xff]
    %v49 = vld [vmem:[#allocation5 + $0x18] sm:$0xff]
    %v50 = vld [vmem:[#allocation5 + $0x20] sm:$0xff]
    %v51 = vld [vmem:[#allocation5 + $0x28] sm:$0xff]
    %v52 = vld [vmem:[#allocation5 + $0x138] sm:$0xff]
    %v53 = vld [vmem:[#allocation5 + $0x140] sm:$0x1]
    %vm54 = vcmask 392192
    %v56 = vsel %vm54, %v44, 0
    %v59 = vsel %vm54, %v45, 0
    %61 = vmatprep.subr.mxu0 0.0
    %62 = vmatpush1.msra.mxu0 %v46
    %63 = vmatprep.subr.mxu0 0.0
    %64 = vmatpush1.msra.mxu0 %v47
    %65 = vmatprep.subr.mxu0 0.0
    %66 = vmatpush1.msra.mxu0 %v48
    %67 = vmatprep.subr.mxu0 0.0
    %68 = vmatpush1.msra.mxu0 %v49
    %69 = vmatprep.subr.mxu0 0.0
    %70 = vmatpush1.msra.mxu0 %v50
    %71 = vmatprep.subr.mxu0 0.0
    %72 = vmatpush1.msra.mxu0 %v51
    %73 = vmatprep.subr.mxu0 0.0
    %74 = vmatpush1.msra.mxu0 0.0
    %75 = vmatprep.subr.mxu0 0.0
    %76 = vmatpush1.msra.mxu0 0.0
    %77 = vmatprep.subr.mxu0 0.0
    %78 = vmatpush1.msra.mxu0 0.0
    %79 = vmatprep.subr.mxu0 0.0
    %80 = vmatpush1.msra.mxu0 0.0
    %81 = vmatprep.subr.mxu0 0.0
    %82 = vmatpush1.msra.mxu0 0.0
    %83 = vmatprep.subr.mxu0 0.0
    %84 = vmatpush1.msra.mxu0 0.0
    %85 = vmatprep.subr.mxu0 0.0
    %86 = vmatpush1.msra.mxu0 0.0
    %87 = vmatprep.subr.mxu0 0.0
    %88 = vmatpush1.msra.mxu0 0.0
    %89 = vmatprep.subr.mxu0 0.0
    %90 = vmatpush1.msra.mxu0 0.0
    %91 = vmatprep.subr.mxu0 0.0
    %92 = vmatpush1.msra.mxu0 0.0
    %93 = vmatprep.subr.mxu0 0.0
    %94 = vmatpush1.msra.mxu0 0.0
    %95 = vmatprep.subr.mxu0 0.0
    %96 = vmatpush1.msra.mxu0 0.0
    %97 = vmatprep.subr.mxu0 0.0
    %98 = vmatpush1.msra.mxu0 0.0
    %99 = vmatprep.subr.mxu0 0.0
    %100 = vmatpush1.msra.mxu0 0.0
    %101 = vmatprep.subr.mxu0 0.0
    %102 = vmatpush1.msra.mxu0 0.0
    %103 = vmatprep.subr.mxu0 0.0
    %104 = vmatpush1.msra.mxu0 0.0
    %105 = vmatprep.subr.mxu0 0.0
    %106 = vmatpush1.msra.mxu0 0.0
    %107 = vmatprep.subr.mxu0 0.0
    %108 = vmatpush1.msra.mxu0 0.0
    %109 = vmatprep.subr.mxu0 0.0
    %110 = vmatpush1.msra.mxu0 0.0
    %111 = vmatprep.subr.mxu0 0.0
    %112 = vmatpush1.msra.mxu0 0.0
    %113 = vmatprep.subr.mxu0 0.0
    %114 = vmatpush1.msra.mxu0 0.0
    %115 = vmatprep.subr.mxu0 0.0
    %116 = vmatpush1.msra.mxu0 0.0
    %117 = vmatprep.subr.mxu0 0.0
    %118 = vmatpush1.msra.mxu0 0.0
    %119 = vmatprep.subr.mxu0 0.0
    %120 = vmatpush1.msra.mxu0 0.0
    %121 = vmatprep.subr.mxu0 0.0
    %122 = vmatpush1.msra.mxu0 0.0
    %123 = vmatprep.subr.mxu0 0.0
    %124 = vmatpush1.msra.mxu0 0.0
    %125 = vmatprep.mubr.f32.mxu0 0.0
    %126 = vmatmul.mubr.f32.gmra.mrb[0].mxu0 %v56
    %v127 = vpop.f32.mrb[0].mxu0
    %v128 = vadd.f32 %v52, %v127
    %v129 = vpop.f32.mrb[0].mxu0
    %130 = vmatprep.mubr.f32.mxu0 0.0
    %131 = vmatmul.mubr.f32.gmra.mrb[0].mxu0 %v59
    %v132 = vpop.f32.mrb[0].mxu0
    %v133 = vadd.f32 %v53, %v132
    %v134 = vpop.f32.mrb[0].mxu0
    %135 = vdwg.mxu0
    %v136 = vld [vmem:[#allocation5 + $0x30] sm:$0xff]
    %v137 = vld [vmem:[#allocation5 + $0x38] sm:$0xff]
    %v138 = vld [vmem:[#allocation5 + $0x40] sm:$0xff]
    %v139 = vld [vmem:[#allocation5 + $0x48] sm:$0xff]
    %vm140 = vcmask 261120
    %v142 = vsel %vm140, %v128, 0
    %144 = vmatprep.subr.mxu0 0.0
    %145 = vmatpush1.msra.mxu0 %v136
    %146 = vmatprep.subr.mxu0 0.0
    %147 = vmatpush1.msra.mxu0 %v137
    %148 = vmatprep.subr.mxu0 0.0
    %149 = vmatpush1.msra.mxu0 %v138
    %150 = vmatprep.subr.mxu0 0.0
    %151 = vmatpush1.msra.mxu0 %v139
    %152 = vmatprep.subr.mxu0 0.0
    %153 = vmatpush1.msra.mxu0 0.0
    %154 = vmatprep.subr.mxu0 0.0
    %155 = vmatpush1.msra.mxu0 0.0
    %156 = vmatprep.subr.mxu0 0.0
    %157 = vmatpush1.msra.mxu0 0.0
    %158 = vmatprep.subr.mxu0 0.0
    %159 = vmatpush1.msra.mxu0 0.0
    %160 = vmatprep.subr.mxu0 0.0
    %161 = vmatpush1.msra.mxu0 0.0
    %162 = vmatprep.subr.mxu0 0.0
    %163 = vmatpush1.msra.mxu0 0.0
    %164 = vmatprep.subr.mxu0 0.0
    %165 = vmatpush1.msra.mxu0 0.0
    %166 = vmatprep.subr.mxu0 0.0
    %167 = vmatpush1.msra.mxu0 0.0
    %168 = vmatprep.subr.mxu0 0.0
    %169 = vmatpush1.msra.mxu0 0.0
    %170 = vmatprep.subr.mxu0 0.0
    %171 = vmatpush1.msra.mxu0 0.0
    %172 = vmatprep.subr.mxu0 0.0
    %173 = vmatpush1.msra.mxu0 0.0
    %174 = vmatprep.subr.mxu0 0.0
    %175 = vmatpush1.msra.mxu0 0.0
    %176 = vmatprep.subr.mxu0 0.0
    %177 = vmatpush1.msra.mxu0 0.0
    %178 = vmatprep.subr.mxu0 0.0
    %179 = vmatpush1.msra.mxu0 0.0
    %180 = vmatprep.subr.mxu0 0.0
    %181 = vmatpush1.msra.mxu0 0.0
    %182 = vmatprep.subr.mxu0 0.0
    %183 = vmatpush1.msra.mxu0 0.0
    %184 = vmatprep.subr.mxu0 0.0
    %185 = vmatpush1.msra.mxu0 0.0
    %186 = vmatprep.subr.mxu0 0.0
    %187 = vmatpush1.msra.mxu0 0.0
    %188 = vmatprep.subr.mxu0 0.0
    %189 = vmatpush1.msra.mxu0 0.0
    %190 = vmatprep.subr.mxu0 0.0
    %191 = vmatpush1.msra.mxu0 0.0
    %192 = vmatprep.subr.mxu0 0.0
    %193 = vmatpush1.msra.mxu0 0.0
    %194 = vmatprep.subr.mxu0 0.0
    %195 = vmatpush1.msra.mxu0 0.0
    %196 = vmatprep.subr.mxu0 0.0
    %197 = vmatpush1.msra.mxu0 0.0
    %198 = vmatprep.subr.mxu0 0.0
    %199 = vmatpush1.msra.mxu0 0.0
    %200 = vmatprep.subr.mxu0 0.0
    %201 = vmatpush1.msra.mxu0 0.0
    %202 = vmatprep.subr.mxu0 0.0
    %203 = vmatpush1.msra.mxu0 0.0
    %204 = vmatprep.subr.mxu0 0.0
    %205 = vmatpush1.msra.mxu0 0.0
    %206 = vmatprep.subr.mxu0 0.0
    %207 = vmatpush1.msra.mxu0 0.0
    %208 = vmatprep.mubr.f32.mxu0 0.0
    %209 = vmatmul.mubr.f32.gmra.mrb[0].mxu0 %v142
    %v210 = vpop.f32.mrb[0].mxu0
    %v211 = vadd.f32 0.0, %v210
    %v212 = vpop.f32.mrb[0].mxu0
    %213 = vdwg.mxu0
    %v214 = vld [vmem:[#allocation5 + $0x50] sm:$0xff]
    %v215 = vld [vmem:[#allocation5 + $0x58] sm:$0xff]
    %v216 = vld [vmem:[#allocation5 + $0x60] sm:$0xff]
    %v217 = vld [vmem:[#allocation5 + $0x68] sm:$0xff]
    %v219 = vsel %vm140, %v133, 0
    %221 = vmatprep.subr.mxu0 0.0
    %222 = vmatpush1.msra.mxu0 %v214
    %223 = vmatprep.subr.mxu0 0.0
    %224 = vmatpush1.msra.mxu0 %v215
    %225 = vmatprep.subr.mxu0 0.0
    %226 = vmatpush1.msra.mxu0 %v216
    %227 = vmatprep.subr.mxu0 0.0
    %228 = vmatpush1.msra.mxu0 %v217
    %229 = vmatprep.subr.mxu0 0.0
    %230 = vmatpush1.msra.mxu0 0.0
    %231 = vmatprep.subr.mxu0 0.0
    %232 = vmatpush1.msra.mxu0 0.0
    %233 = vmatprep.subr.mxu0 0.0
    %234 = vmatpush1.msra.mxu0 0.0
    %235 = vmatprep.subr.mxu0 0.0
    %236 = vmatpush1.msra.mxu0 0.0
    %237 = vmatprep.subr.mxu0 0.0
    %238 = vmatpush1.msra.mxu0 0.0
    %239 = vmatprep.subr.mxu0 0.0
    %240 = vmatpush1.msra.mxu0 0.0
    %241 = vmatprep.subr.mxu0 0.0
    %242 = vmatpush1.msra.mxu0 0.0
    %243 = vmatprep.subr.mxu0 0.0
    %244 = vmatpush1.msra.mxu0 0.0
    %245 = vmatprep.subr.mxu0 0.0
    %246 = vmatpush1.msra.mxu0 0.0
    %247 = vmatprep.subr.mxu0 0.0
    %248 = vmatpush1.msra.mxu0 0.0
    %249 = vmatprep.subr.mxu0 0.0
    %250 = vmatpush1.msra.mxu0 0.0
    %251 = vmatprep.subr.mxu0 0.0
    %252 = vmatpush1.msra.mxu0 0.0
    %253 = vmatprep.subr.mxu0 0.0
    %254 = vmatpush1.msra.mxu0 0.0
    %255 = vmatprep.subr.mxu0 0.0
    %256 = vmatpush1.msra.mxu0 0.0
    %257 = vmatprep.subr.mxu0 0.0
    %258 = vmatpush1.msra.mxu0 0.0
    %259 = vmatprep.subr.mxu0 0.0
    %260 = vmatpush1.msra.mxu0 0.0
    %261 = vmatprep.subr.mxu0 0.0
    %262 = vmatpush1.msra.mxu0 0.0
    %263 = vmatprep.subr.mxu0 0.0
    %264 = vmatpush1.msra.mxu0 0.0
    %265 = vmatprep.subr.mxu0 0.0
    %266 = vmatpush1.msra.mxu0 0.0
    %267 = vmatprep.subr.mxu0 0.0
    %268 = vmatpush1.msra.mxu0 0.0
    %269 = vmatprep.subr.mxu0 0.0
    %270 = vmatpush1.msra.mxu0 0.0
    %271 = vmatprep.subr.mxu0 0.0
    %272 = vmatpush1.msra.mxu0 0.0
    %273 = vmatprep.subr.mxu0 0.0
    %274 = vmatpush1.msra.mxu0 0.0
    %275 = vmatprep.subr.mxu0 0.0
    %276 = vmatpush1.msra.mxu0 0.0
    %277 = vmatprep.subr.mxu0 0.0
    %278 = vmatpush1.msra.mxu0 0.0
    %279 = vmatprep.subr.mxu0 0.0
    %280 = vmatpush1.msra.mxu0 0.0
    %281 = vmatprep.subr.mxu0 0.0
    %282 = vmatpush1.msra.mxu0 0.0
    %283 = vmatprep.subr.mxu0 0.0
    %284 = vmatpush1.msra.mxu0 0.0
    %285 = vmatprep.mubr.f32.mxu0 0.0
    %286 = vmatmul.mubr.f32.gmra.mrb[0].mxu0 %v142
    %v287 = vpop.f32.mrb[0].mxu0
    %v288 = vadd.f32 0.0, %v287
    %v289 = vpop.f32.mrb[0].mxu0
    %290 = vmatprep.mubr.f32.mxu0 0.0
    %291 = vmatmul.mubr.f32.gmra.mrb[0].mxu0 %v219
    %v292 = vpop.f32.mrb[0].mxu0
    %v293 = vadd.f32 0.0, %v292
    %v294 = vpop.f32.mrb[0].mxu0
    %295 = vdwg.mxu0
    %v296 = vld [vmem:[#allocation5 + $0x70] sm:$0xff]
    %v297 = vld [vmem:[#allocation5 + $0x78] sm:$0xff]
    %v298 = vld [vmem:[#allocation5 + $0x80] sm:$0xff]
    %v299 = vld [vmem:[#allocation5 + $0x88] sm:$0xff]
    %300 = vmatprep.subr.mxu0 0.0
    %301 = vmatpush1.msra.mxu0 %v296
    %302 = vmatprep.subr.mxu0 0.0
    %303 = vmatpush1.msra.mxu0 %v297
    %304 = vmatprep.subr.mxu0 0.0
    %305 = vmatpush1.msra.mxu0 %v298
    %306 = vmatprep.subr.mxu0 0.0
    %307 = vmatpush1.msra.mxu0 %v299
    %308 = vmatprep.subr.mxu0 0.0
    %309 = vmatpush1.msra.mxu0 0.0
    %310 = vmatprep.subr.mxu0 0.0
    %311 = vmatpush1.msra.mxu0 0.0
    %312 = vmatprep.subr.mxu0 0.0
    %313 = vmatpush1.msra.mxu0 0.0
    %314 = vmatprep.subr.mxu0 0.0
    %315 = vmatpush1.msra.mxu0 0.0
    %316 = vmatprep.subr.mxu0 0.0
    %317 = vmatpush1.msra.mxu0 0.0
    %318 = vmatprep.subr.mxu0 0.0
    %319 = vmatpush1.msra.mxu0 0.0
    %320 = vmatprep.subr.mxu0 0.0
    %321 = vmatpush1.msra.mxu0 0.0
    %322 = vmatprep.subr.mxu0 0.0
    %323 = vmatpush1.msra.mxu0 0.0
    %324 = vmatprep.subr.mxu0 0.0
    %325 = vmatpush1.msra.mxu0 0.0
    %326 = vmatprep.subr.mxu0 0.0
    %327 = vmatpush1.msra.mxu0 0.0
    %328 = vmatprep.subr.mxu0 0.0
    %329 = vmatpush1.msra.mxu0 0.0
    %330 = vmatprep.subr.mxu0 0.0
    %331 = vmatpush1.msra.mxu0 0.0
    %332 = vmatprep.subr.mxu0 0.0
    %333 = vmatpush1.msra.mxu0 0.0
    %334 = vmatprep.subr.mxu0 0.0
    %335 = vmatpush1.msra.mxu0 0.0
    %336 = vmatprep.subr.mxu0 0.0
    %337 = vmatpush1.msra.mxu0 0.0
    %338 = vmatprep.subr.mxu0 0.0
    %339 = vmatpush1.msra.mxu0 0.0
    %340 = vmatprep.subr.mxu0 0.0
    %341 = vmatpush1.msra.mxu0 0.0
    %342 = vmatprep.subr.mxu0 0.0
    %343 = vmatpush1.msra.mxu0 0.0
    %344 = vmatprep.subr.mxu0 0.0
    %345 = vmatpush1.msra.mxu0 0.0
    %346 = vmatprep.subr.mxu0 0.0
    %347 = vmatpush1.msra.mxu0 0.0
    %348 = vmatprep.subr.mxu0 0.0
    %349 = vmatpush1.msra.mxu0 0.0
    %350 = vmatprep.subr.mxu0 0.0
    %351 = vmatpush1.msra.mxu0 0.0
    %352 = vmatprep.subr.mxu0 0.0
    %353 = vmatpush1.msra.mxu0 0.0
    %354 = vmatprep.subr.mxu0 0.0
    %355 = vmatpush1.msra.mxu0 0.0
    %356 = vmatprep.subr.mxu0 0.0
    %357 = vmatpush1.msra.mxu0 0.0
    %358 = vmatprep.subr.mxu0 0.0
    %359 = vmatpush1.msra.mxu0 0.0
    %360 = vmatprep.subr.mxu0 0.0
    %361 = vmatpush1.msra.mxu0 0.0
    %362 = vmatprep.subr.mxu0 0.0
    %363 = vmatpush1.msra.mxu0 0.0
    %364 = vmatprep.mubr.f32.mxu0 0.0
    %365 = vmatmul.mubr.f32.gmra.mrb[0].mxu0 %v142
    %v366 = vpop.f32.mrb[0].mxu0
    %v367 = vadd.f32 0.0, %v366
    %v368 = vpop.f32.mrb[0].mxu0
    %369 = vmatprep.mubr.f32.mxu0 0.0
    %370 = vmatmul.mubr.f32.gmra.mrb[0].mxu0 %v219
    %v371 = vpop.f32.mrb[0].mxu0
    %v372 = vadd.f32 0.0, %v371
    %v373 = vpop.f32.mrb[0].mxu0
    %374 = vdwg.mxu0
    %v376 = vsel %vm140, %v211, 0
    %v379 = vsel %vm140, %v288, 0
    %v382 = vsel %vm140, %v293, 0
    %384 = vmatprep.subr.mxu0 0.0
    %385 = vmatpush1.xpose.msra.mxu0 %v379
    %386 = vmatprep.subr.mxu0 0.0
    %387 = vmatpush1.xpose.msra.mxu0 %v382
    %388 = vmatprep.subr.mxu0 0.0
    %389 = vmatpush1.xpose.msra.mxu0 0.0
    %390 = vmatprep.subr.mxu0 0.0
    %391 = vmatpush1.xpose.msra.mxu0 0.0
    %392 = vmatprep.subr.mxu0 0.0
    %393 = vmatpush1.xpose.msra.mxu0 0.0
    %394 = vmatprep.subr.mxu0 0.0
    %395 = vmatpush1.xpose.msra.mxu0 0.0
    %396 = vmatprep.subr.mxu0 0.0
    %397 = vmatpush1.xpose.msra.mxu0 0.0
    %398 = vmatprep.subr.mxu0 0.0
    %399 = vmatpush1.xpose.msra.mxu0 0.0
    %400 = vmatprep.subr.mxu0 0.0
    %401 = vmatpush1.xpose.msra.mxu0 0.0
    %402 = vmatprep.subr.mxu0 0.0
    %403 = vmatpush1.xpose.msra.mxu0 0.0
    %404 = vmatprep.subr.mxu0 0.0
    %405 = vmatpush1.xpose.msra.mxu0 0.0
    %406 = vmatprep.subr.mxu0 0.0
    %407 = vmatpush1.xpose.msra.mxu0 0.0
    %408 = vmatprep.subr.mxu0 0.0
    %409 = vmatpush1.xpose.msra.mxu0 0.0
    %410 = vmatprep.subr.mxu0 0.0
    %411 = vmatpush1.xpose.msra.mxu0 0.0
    %412 = vmatprep.subr.mxu0 0.0
    %413 = vmatpush1.xpose.msra.mxu0 0.0
    %414 = vmatprep.subr.mxu0 0.0
    %415 = vmatpush1.xpose.msra.mxu0 0.0
    %416 = vmatprep.subr.mxu0 0.0
    %417 = vmatpush1.xpose.msra.mxu0 0.0
    %418 = vmatprep.subr.mxu0 0.0
    %419 = vmatpush1.xpose.msra.mxu0 0.0
    %420 = vmatprep.subr.mxu0 0.0
    %421 = vmatpush1.xpose.msra.mxu0 0.0
    %422 = vmatprep.subr.mxu0 0.0
    %423 = vmatpush1.xpose.msra.mxu0 0.0
    %424 = vmatprep.subr.mxu0 0.0
    %425 = vmatpush1.xpose.msra.mxu0 0.0
    %426 = vmatprep.subr.mxu0 0.0
    %427 = vmatpush1.xpose.msra.mxu0 0.0
    %428 = vmatprep.subr.mxu0 0.0
    %429 = vmatpush1.xpose.msra.mxu0 0.0
    %430 = vmatprep.subr.mxu0 0.0
    %431 = vmatpush1.xpose.msra.mxu0 0.0
    %432 = vmatprep.subr.mxu0 0.0
    %433 = vmatpush1.xpose.msra.mxu0 0.0
    %434 = vmatprep.subr.mxu0 0.0
    %435 = vmatpush1.xpose.msra.mxu0 0.0
    %436 = vmatprep.subr.mxu0 0.0
    %437 = vmatpush1.xpose.msra.mxu0 0.0
    %438 = vmatprep.subr.mxu0 0.0
    %439 = vmatpush1.xpose.msra.mxu0 0.0
    %440 = vmatprep.subr.mxu0 0.0
    %441 = vmatpush1.xpose.msra.mxu0 0.0
    %442 = vmatprep.subr.mxu0 0.0
    %443 = vmatpush1.xpose.msra.mxu0 0.0
    %444 = vmatprep.subr.mxu0 0.0
    %445 = vmatpush1.xpose.msra.mxu0 0.0
    %446 = vmatprep.subr.mxu0 0.0
    %447 = vmatpush1.xpose.msra.mxu0 0.0
    %448 = vmatprep.mubr.f32.mxu0 0.0
    %449 = vmatmul.mubr.f32.gmra.mrb[0].mxu0 %v376
    %v450 = vpop.f32.mrb[0].mxu0
    %v451 = vadd.f32 0.0, %v450
    %v452 = vpop.f32.mrb[0].mxu0
    %453 = vdwg.mxu0
    %v454 = vlaneseq
    %v455 = vand.u32 %v454, 127
    %v456 = vstv %s43
    %vm457 = vcmp.lt.s32.totalorder %v455, %v456
    %v458 = vsel %vm457, %v451, -1e+30
    %vm459 = vcmask 65536
    %v460 = vsel %vm459, %v458, -inf
    %461 = vmax.xlane.f32.xlu0 %v460
    %v462 = vpop.xlane.xlu0 %461
    %v463 = vsub.f32 %v458, %v462
    %v464 = vmul.f32 %v463, 1.442695
    %v465 = vpow.pop %v464
    %v466 = vsel %vm459, %v465, 0.0
    %467 = vadd.xlane.f32.xlu0 %v466
    %v468 = vpop.xlane.xlu0 %467
    %v469 = vrcp.pop %v468
    %v470 = vmul.f32 %v465, %v469
    %vm471 = vcmask 72704
    %v473 = vsel %vm471, %v470, 0
    %vm475 = vcmask 1040384
    %v477 = vsel %vm475, %v372, 0
    %479 = vmatprep.subr.mxu0 0.0
    %480 = vmatpush1.msra.mxu0 %v367
    %481 = vmatprep.subr.mxu0 0.0
    %482 = vmatpush1.msra.mxu0 %v477
    %483 = vmatprep.subr.mxu0 0.0
    %484 = vmatpush1.msra.mxu0 0.0
    %485 = vmatprep.subr.mxu0 0.0
    %486 = vmatpush1.msra.mxu0 0.0
    %487 = vmatprep.subr.mxu0 0.0
    %488 = vmatpush1.msra.mxu0 0.0
    %489 = vmatprep.subr.mxu0 0.0
    %490 = vmatpush1.msra.mxu0 0.0
    %491 = vmatprep.subr.mxu0 0.0
    %492 = vmatpush1.msra.mxu0 0.0
    %493 = vmatprep.subr.mxu0 0.0
    %494 = vmatpush1.msra.mxu0 0.0
    %495 = vmatprep.subr.mxu0 0.0
    %496 = vmatpush1.msra.mxu0 0.0
    %497 = vmatprep.subr.mxu0 0.0
    %498 = vmatpush1.msra.mxu0 0.0
    %499 = vmatprep.subr.mxu0 0.0
    %500 = vmatpush1.msra.mxu0 0.0
    %501 = vmatprep.subr.mxu0 0.0
    %502 = vmatpush1.msra.mxu0 0.0
    %503 = vmatprep.subr.mxu0 0.0
    %504 = vmatpush1.msra.mxu0 0.0
    %505 = vmatprep.subr.mxu0 0.0
    %506 = vmatpush1.msra.mxu0 0.0
    %507 = vmatprep.subr.mxu0 0.0
    %508 = vmatpush1.msra.mxu0 0.0
    %509 = vmatprep.subr.mxu0 0.0
    %510 = vmatpush1.msra.mxu0 0.0
    %511 = vmatprep.subr.mxu0 0.0
    %512 = vmatpush1.msra.mxu0 0.0
    %513 = vmatprep.subr.mxu0 0.0
    %514 = vmatpush1.msra.mxu0 0.0
    %515 = vmatprep.subr.mxu0 0.0
    %516 = vmatpush1.msra.mxu0 0.0
    %517 = vmatprep.subr.mxu0 0.0
    %518 = vmatpush1.msra.mxu0 0.0
    %519 = vmatprep.subr.mxu0 0.0
    %520 = vmatpush1.msra.mxu0 0.0
    %521 = vmatprep.subr.mxu0 0.0
    %522 = vmatpush1.msra.mxu0 0.0
    %523 = vmatprep.subr.mxu0 0.0
    %524 = vmatpush1.msra.mxu0 0.0
    %525 = vmatprep.subr.mxu0 0.0
    %526 = vmatpush1.msra.mxu0 0.0
    %527 = vmatprep.subr.mxu0 0.0
    %528 = vmatpush1.msra.mxu0 0.0
    %529 = vmatprep.subr.mxu0 0.0
    %530 = vmatpush1.msra.mxu0 0.0
    %531 = vmatprep.subr.mxu0 0.0
    %532 = vmatpush1.msra.mxu0 0.0
    %533 = vmatprep.subr.mxu0 0.0
    %534 = vmatpush1.msra.mxu0 0.0
    %535 = vmatprep.subr.mxu0 0.0
    %536 = vmatpush1.msra.mxu0 0.0
    %537 = vmatprep.subr.mxu0 0.0
    %538 = vmatpush1.msra.mxu0 0.0
    %539 = vmatprep.subr.mxu0 0.0
    %540 = vmatpush1.msra.mxu0 0.0
    %541 = vmatprep.subr.mxu0 0.0
    %542 = vmatpush1.msra.mxu0 0.0
    %543 = vmatprep.mubr.f32.mxu0 0.0
    %544 = vmatmul.mubr.f32.gmra.mrb[0].mxu0 %v473
    %v545 = vpop.f32.mrb[0].mxu0
    %v546 = vadd.f32 0.0, %v545
    %v547 = vpop.f32.mrb[0].mxu0
    %548 = vdwg.mxu0
    %v549 = vld [vmem:[#allocation5 + $0x90] sm:$0xff]
    %v550 = vld [vmem:[#allocation5 + $0x98] sm:$0xff]
    %v551 = vld [vmem:[#allocation5 + $0xa0] sm:$0xff]
    %v552 = vld [vmem:[#allocation5 + $0xa8] sm:$0xff]
    %v554 = vsel %vm140, %v546, 0
    %556 = vmatprep.subr.mxu0 0.0
    %557 = vmatpush1.msra.mxu0 %v549
    %558 = vmatprep.subr.mxu0 0.0
    %559 = vmatpush1.msra.mxu0 %v550
    %560 = vmatprep.subr.mxu0 0.0
    %561 = vmatpush1.msra.mxu0 %v551
    %562 = vmatprep.subr.mxu0 0.0
    %563 = vmatpush1.msra.mxu0 %v552
    %564 = vmatprep.subr.mxu0 0.0
    %565 = vmatpush1.msra.mxu0 0.0
    %566 = vmatprep.subr.mxu0 0.0
    %567 = vmatpush1.msra.mxu0 0.0
    %568 = vmatprep.subr.mxu0 0.0
    %569 = vmatpush1.msra.mxu0 0.0
    %570 = vmatprep.subr.mxu0 0.0
    %571 = vmatpush1.msra.mxu0 0.0
    %572 = vmatprep.subr.mxu0 0.0
    %573 = vmatpush1.msra.mxu0 0.0
    %574 = vmatprep.subr.mxu0 0.0
    %575 = vmatpush1.msra.mxu0 0.0
    %576 = vmatprep.subr.mxu0 0.0
    %577 = vmatpush1.msra.mxu0 0.0
    %578 = vmatprep.subr.mxu0 0.0
    %579 = vmatpush1.msra.mxu0 0.0
    %580 = vmatprep.subr.mxu0 0.0
    %581 = vmatpush1.msra.mxu0 0.0
    %582 = vmatprep.subr.mxu0 0.0
    %583 = vmatpush1.msra.mxu0 0.0
    %584 = vmatprep.subr.mxu0 0.0
    %585 = vmatpush1.msra.mxu0 0.0
    %586 = vmatprep.subr.mxu0 0.0
    %587 = vmatpush1.msra.mxu0 0.0
    %588 = vmatprep.subr.mxu0 0.0
    %589 = vmatpush1.msra.mxu0 0.0
    %590 = vmatprep.subr.mxu0 0.0
    %591 = vmatpush1.msra.mxu0 0.0
    %592 = vmatprep.subr.mxu0 0.0
    %593 = vmatpush1.msra.mxu0 0.0
    %594 = vmatprep.subr.mxu0 0.0
    %595 = vmatpush1.msra.mxu0 0.0
    %596 = vmatprep.subr.mxu0 0.0
    %597 = vmatpush1.msra.mxu0 0.0
    %598 = vmatprep.subr.mxu0 0.0
    %599 = vmatpush1.msra.mxu0 0.0
    %600 = vmatprep.subr.mxu0 0.0
    %601 = vmatpush1.msra.mxu0 0.0
    %602 = vmatprep.subr.mxu0 0.0
    %603 = vmatpush1.msra.mxu0 0.0
    %604 = vmatprep.subr.mxu0 0.0
    %605 = vmatpush1.msra.mxu0 0.0
    %606 = vmatprep.subr.mxu0 0.0
    %607 = vmatpush1.msra.mxu0 0.0
    %608 = vmatprep.subr.mxu0 0.0
    %609 = vmatpush1.msra.mxu0 0.0
    %610 = vmatprep.subr.mxu0 0.0
    %611 = vmatpush1.msra.mxu0 0.0
    %612 = vmatprep.subr.mxu0 0.0
    %613 = vmatpush1.msra.mxu0 0.0
    %614 = vmatprep.subr.mxu0 0.0
    %615 = vmatpush1.msra.mxu0 0.0
    %616 = vmatprep.subr.mxu0 0.0
    %617 = vmatpush1.msra.mxu0 0.0
    %618 = vmatprep.subr.mxu0 0.0
    %619 = vmatpush1.msra.mxu0 0.0
    %620 = vmatprep.mubr.f32.mxu0 0.0
    %621 = vmatmul.mubr.f32.gmra.mrb[0].mxu0 %v554
    %v622 = vpop.f32.mrb[0].mxu0
    %v623 = vadd.f32 0.0, %v622
    %v624 = vpop.f32.mrb[0].mxu0
    %625 = vdwg.mxu0
    %v626 = vadd.f32 %v128, %v623
    %vm627 = vcmask 253952
    %v628 = vsel %vm627, %v626, 0.0
    %629 = vadd.xlane.f32.xlu0 %v628
    %v630 = vpop.xlane.xlu0 %629
    %v631 = vrcp.pop 32.0
    %v632 = vmul.f32 %v630, %v631
    %v633 = vsub.f32 %v626, %v632
    %v634 = vmul.f32 %v633, %v633
    %v635 = vsel %vm627, %v634, 0.0
    %636 = vadd.xlane.f32.xlu0 %v635
    %v637 = vpop.xlane.xlu0 %636
    %v638 = vmul.f32 %v637, %v631
    %v639 = vadd.f32 %v638, 1e-05
    %v640 = vrsqrt.pop %v639
    %v641 = vmul.f32 %v633, %v640
    %v642 = vld [vmem:[#allocation5 + $0x130] sm:$0x1]
    %v643 = vmul.f32 %v641, %v642
    %v644 = vld [vmem:[#allocation5 + $0x131] sm:$0x1]
    %v645 = vadd.f32 %v643, %v644
    %v646 = vld [vmem:[#allocation5 + $0xb0] sm:$0xff]
    %v647 = vld [vmem:[#allocation5 + $0xb8] sm:$0xff]
    %v648 = vld [vmem:[#allocation5 + $0xc0] sm:$0xff]
    %v649 = vld [vmem:[#allocation5 + $0xc8] sm:$0xff]
    %v650 = vld [vmem:[#allocation5 + $0x132] sm:$0x1]
    %v652 = vsel %vm140, %v645, 0
    %654 = vmatprep.subr.mxu0 0.0
    %655 = vmatpush1.msra.mxu0 %v646
    %656 = vmatprep.subr.mxu0 0.0
    %657 = vmatpush1.msra.mxu0 %v647
    %658 = vmatprep.subr.mxu0 0.0
    %659 = vmatpush1.msra.mxu0 %v648
    %660 = vmatprep.subr.mxu0 0.0
    %661 = vmatpush1.msra.mxu0 %v649
    %662 = vmatprep.subr.mxu0 0.0
    %663 = vmatpush1.msra.mxu0 0.0
    %664 = vmatprep.subr.mxu0 0.0
    %665 = vmatpush1.msra.mxu0 0.0
    %666 = vmatprep.subr.mxu0 0.0
    %667 = vmatpush1.msra.mxu0 0.0
    %668 = vmatprep.subr.mxu0 0.0
    %669 = vmatpush1.msra.mxu0 0.0
    %670 = vmatprep.subr.mxu0 0.0
    %671 = vmatpush1.msra.mxu0 0.0
    %672 = vmatprep.subr.mxu0 0.0
    %673 = vmatpush1.msra.mxu0 0.0
    %674 = vmatprep.subr.mxu0 0.0
    %675 = vmatpush1.msra.mxu0 0.0
    %676 = vmatprep.subr.mxu0 0.0
    %677 = vmatpush1.msra.mxu0 0.0
    %678 = vmatprep.subr.mxu0 0.0
    %679 = vmatpush1.msra.mxu0 0.0
    %680 = vmatprep.subr.mxu0 0.0
    %681 = vmatpush1.msra.mxu0 0.0
    %682 = vmatprep.subr.mxu0 0.0
    %683 = vmatpush1.msra.mxu0 0.0
    %684 = vmatprep.subr.mxu0 0.0
    %685 = vmatpush1.msra.mxu0 0.0
    %686 = vmatprep.subr.mxu0 0.0
    %687 = vmatpush1.msra.mxu0 0.0
    %688 = vmatprep.subr.mxu0 0.0
    %689 = vmatpush1.msra.mxu0 0.0
    %690 = vmatprep.subr.mxu0 0.0
    %691 = vmatpush1.msra.mxu0 0.0
    %692 = vmatprep.subr.mxu0 0.0
    %693 = vmatpush1.msra.mxu0 0.0
    %694 = vmatprep.subr.mxu0 0.0
    %695 = vmatpush1.msra.mxu0 0.0
    %696 = vmatprep.subr.mxu0 0.0
    %697 = vmatpush1.msra.mxu0 0.0
    %698 = vmatprep.subr.mxu0 0.0
    %699 = vmatpush1.msra.mxu0 0.0
    %700 = vmatprep.subr.mxu0 0.0
    %701 = vmatpush1.msra.mxu0 0.0
    %702 = vmatprep.subr.mxu0 0.0
    %703 = vmatpush1.msra.mxu0 0.0
    %704 = vmatprep.subr.mxu0 0.0
    %705 = vmatpush1.msra.mxu0 0.0
    %706 = vmatprep.subr.mxu0 0.0
    %707 = vmatpush1.msra.mxu0 0.0
    %708 = vmatprep.subr.mxu0 0.0
    %709 = vmatpush1.msra.mxu0 0.0
    %710 = vmatprep.subr.mxu0 0.0
    %711 = vmatpush1.msra.mxu0 0.0
    %712 = vmatprep.subr.mxu0 0.0
    %713 = vmatpush1.msra.mxu0 0.0
    %714 = vmatprep.subr.mxu0 0.0
    %715 = vmatpush1.msra.mxu0 0.0
    %716 = vmatprep.subr.mxu0 0.0
    %717 = vmatpush1.msra.mxu0 0.0
    %718 = vmatprep.mubr.f32.mxu0 0.0
    %719 = vmatmul.mubr.f32.gmra.mrb[0].mxu0 %v652
    %v720 = vpop.f32.mrb[0].mxu0
    %v721 = vadd.f32 %v650, %v720
    %v722 = vpop.f32.mrb[0].mxu0
    %723 = vdwg.mxu0
    %v724 = vmax.f32 %v721, 0.0
    %v725 = vld [vmem:[#allocation5 + $0xd0] sm:$0xff]
    %v726 = vld [vmem:[#allocation5 + $0xd8] sm:$0xff]
    %v727 = vld [vmem:[#allocation5 + $0xe0] sm:$0xff]
    %v728 = vld [vmem:[#allocation5 + $0xe8] sm:$0xff]
    %v729 = vld [vmem:[#allocation5 + $0xf0] sm:$0xff]
    %v730 = vld [vmem:[#allocation5 + $0xf8] sm:$0xff]
    %v731 = vld [vmem:[#allocation5 + $0x100] sm:$0xff]
    %v732 = vld [vmem:[#allocation5 + $0x108] sm:$0xff]
    %v733 = vld [vmem:[#allocation5 + $0x133] sm:$0x1]
    %vm734 = vcmask 523264
    %v736 = vsel %vm734, %v724, 0
    %738 = vmatprep.subr.mxu0 0.0
    %739 = vmatpush1.msra.mxu0 %v725
    %740 = vmatprep.subr.mxu0 0.0
    %741 = vmatpush1.msra.mxu0 %v726
    %742 = vmatprep.subr.mxu0 0.0
    %743 = vmatpush1.msra.mxu0 %v727
    %744 = vmatprep.subr.mxu0 0.0
    %745 = vmatpush1.msra.mxu0 %v728
    %746 = vmatprep.subr.mxu0 0.0
    %747 = vmatpush1.msra.mxu0 %v729
    %748 = vmatprep.subr.mxu0 0.0
    %749 = vmatpush1.msra.mxu0 %v730
    %750 = vmatprep.subr.mxu0 0.0
    %751 = vmatpush1.msra.mxu0 %v731
    %752 = vmatprep.subr.mxu0 0.0
    %753 = vmatpush1.msra.mxu0 %v732
    %754 = vmatprep.subr.mxu0 0.0
    %755 = vmatpush1.msra.mxu0 0.0
    %756 = vmatprep.subr.mxu0 0.0
    %757 = vmatpush1.msra.mxu0 0.0
    %758 = vmatprep.subr.mxu0 0.0
    %759 = vmatpush1.msra.mxu0 0.0
    %760 = vmatprep.subr.mxu0 0.0
    %761 = vmatpush1.msra.mxu0 0.0
    %762 = vmatprep.subr.mxu0 0.0
    %763 = vmatpush1.msra.mxu0 0.0
    %764 = vmatprep.subr.mxu0 0.0
    %765 = vmatpush1.msra.mxu0 0.0
    %766 = vmatprep.subr.mxu0 0.0
    %767 = vmatpush1.msra.mxu0 0.0
    %768 = vmatprep.subr.mxu0 0.0
    %769 = vmatpush1.msra.mxu0 0.0
    %770 = vmatprep.subr.mxu0 0.0
    %771 = vmatpush1.msra.mxu0 0.0
    %772 = vmatprep.subr.mxu0 0.0
    %773 = vmatpush1.msra.mxu0 0.0
    %774 = vmatprep.subr.mxu0 0.0
    %775 = vmatpush1.msra.mxu0 0.0
    %776 = vmatprep.subr.mxu0 0.0
    %777 = vmatpush1.msra.mxu0 0.0
    %778 = vmatprep.subr.mxu0 0.0
    %779 = vmatpush1.msra.mxu0 0.0
    %780 = vmatprep.subr.mxu0 0.0
    %781 = vmatpush1.msra.mxu0 0.0
    %782 = vmatprep.subr.mxu0 0.0
    %783 = vmatpush1.msra.mxu0 0.0
    %784 = vmatprep.subr.mxu0 0.0
    %785 = vmatpush1.msra.mxu0 0.0
    %786 = vmatprep.subr.mxu0 0.0
    %787 = vmatpush1.msra.mxu0 0.0
    %788 = vmatprep.subr.mxu0 0.0
    %789 = vmatpush1.msra.mxu0 0.0
    %790 = vmatprep.subr.mxu0 0.0
    %791 = vmatpush1.msra.mxu0 0.0
    %792 = vmatprep.subr.mxu0 0.0
    %793 = vmatpush1.msra.mxu0 0.0
    %794 = vmatprep.subr.mxu0 0.0
    %795 = vmatpush1.msra.mxu0 0.0
    %796 = vmatprep.subr.mxu0 0.0
    %797 = vmatpush1.msra.mxu0 0.0
    %798 = vmatprep.subr.mxu0 0.0
    %799 = vmatpush1.msra.mxu0 0.0
    %800 = vmatprep.subr.mxu0 0.0
    %801 = vmatpush1.msra.mxu0 0.0
    %802 = vmatprep.mubr.f32.mxu0 0.0
    %803 = vmatmul.mubr.f32.gmra.mrb[0].mxu0 %v736
    %v804 = vpop.f32.mrb[0].mxu0
    %v805 = vadd.f32 %v733, %v804
    %v806 = vpop.f32.mrb[0].mxu0
    %807 = vdwg.mxu0
    %v808 = vadd.f32 %v645, %v805
    %v809 = vsel %vm627, %v808, 0.0
    %810 = vadd.xlane.f32.xlu0 %v809
    %v811 = vpop.xlane.xlu0 %810
    %v812 = vmul.f32 %v811, %v631
    %v813 = vsub.f32 %v808, %v812
    %v814 = vmul.f32 %v813, %v813
    %v815 = vsel %vm627, %v814, 0.0
    %816 = vadd.xlane.f32.xlu0 %v815
    %v817 = vpop.xlane.xlu0 %816
    %v818 = vmul.f32 %v817, %v631
    %v819 = vadd.f32 %v818, 1e-05
    %v820 = vrsqrt.pop %v819
    %v821 = vmul.f32 %v813, %v820
    %v822 = vld [vmem:[#allocation5 + $0x110] sm:$0xff]
    %v823 = vld [vmem:[#allocation5 + $0x118] sm:$0xff]
    %v824 = vld [vmem:[#allocation5 + $0x120] sm:$0xff]
    %v825 = vld [vmem:[#allocation5 + $0x128] sm:$0xff]
    %v826 = vld [vmem:[#allocation5 + $0x134] sm:$0x1]
    %v828 = vsel %vm140, %v821, 0
    %830 = vmatprep.subr.mxu0 0.0
    %831 = vmatpush1.msra.mxu0 %v822
    %832 = vmatprep.subr.mxu0 0.0
    %833 = vmatpush1.msra.mxu0 %v823
    %834 = vmatprep.subr.mxu0 0.0
    %835 = vmatpush1.msra.mxu0 %v824
    %836 = vmatprep.subr.mxu0 0.0
    %837 = vmatpush1.msra.mxu0 %v825
    %838 = vmatprep.subr.mxu0 0.0
    %839 = vmatpush1.msra.mxu0 0.0
    %840 = vmatprep.subr.mxu0 0.0
    %841 = vmatpush1.msra.mxu0 0.0
    %842 = vmatprep.subr.mxu0 0.0
    %843 = vmatpush1.msra.mxu0 0.0
    %844 = vmatprep.subr.mxu0 0.0
    %845 = vmatpush1.msra.mxu0 0.0
    %846 = vmatprep.subr.mxu0 0.0
    %847 = vmatpush1.msra.mxu0 0.0
    %848 = vmatprep.subr.mxu0 0.0
    %849 = vmatpush1.msra.mxu0 0.0
    %850 = vmatprep.subr.mxu0 0.0
    %851 = vmatpush1.msra.mxu0 0.0
    %852 = vmatprep.subr.mxu0 0.0
    %853 = vmatpush1.msra.mxu0 0.0
    %854 = vmatprep.subr.mxu0 0.0
    %855 = vmatpush1.msra.mxu0 0.0
    %856 = vmatprep.subr.mxu0 0.0
    %857 = vmatpush1.msra.mxu0 0.0
    %858 = vmatprep.subr.mxu0 0.0
    %859 = vmatpush1.msra.mxu0 0.0
    %860 = vmatprep.subr.mxu0 0.0
    %861 = vmatpush1.msra.mxu0 0.0
    %862 = vmatprep.subr.mxu0 0.0
    %863 = vmatpush1.msra.mxu0 0.0
    %864 = vmatprep.subr.mxu0 0.0
    %865 = vmatpush1.msra.mxu0 0.0
    %866 = vmatprep.subr.mxu0 0.0
    %867 = vmatpush1.msra.mxu0 0.0
    %868 = vmatprep.subr.mxu0 0.0
    %869 = vmatpush1.msra.mxu0 0.0
    %870 = vmatprep.subr.mxu0 0.0
    %871 = vmatpush1.msra.mxu0 0.0
    %872 = vmatprep.subr.mxu0 0.0
    %873 = vmatpush1.msra.mxu0 0.0
    %874 = vmatprep.subr.mxu0 0.0
    %875 = vmatpush1.msra.mxu0 0.0
    %876 = vmatprep.subr.mxu0 0.0
    %877 = vmatpush1.msra.mxu0 0.0
    %878 = vmatprep.subr.mxu0 0.0
    %879 = vmatpush1.msra.mxu0 0.0
    %880 = vmatprep.subr.mxu0 0.0
    %881 = vmatpush1.msra.mxu0 0.0
    %882 = vmatprep.subr.mxu0 0.0
    %883 = vmatpush1.msra.mxu0 0.0
    %884 = vmatprep.subr.mxu0 0.0
    %885 = vmatpush1.msra.mxu0 0.0
    %886 = vmatprep.subr.mxu0 0.0
    %887 = vmatpush1.msra.mxu0 0.0
    %888 = vmatprep.subr.mxu0 0.0
    %889 = vmatpush1.msra.mxu0 0.0
    %890 = vmatprep.subr.mxu0 0.0
    %891 = vmatpush1.msra.mxu0 0.0
    %892 = vmatprep.subr.mxu0 0.0
    %893 = vmatpush1.msra.mxu0 0.0
    %894 = vmatprep.mubr.f32.mxu0 0.0
    %895 = vmatmul.mubr.f32.gmra.mrb[0].mxu0 %v828
    %v896 = vpop.f32.mrb[0].mxu0
    %v897 = vadd.f32 %v826, %v896
    %v898 = vpop.f32.mrb[0].mxu0
    %899 = vdwg.mxu0
    %900 = vst [vmem:[%s3] sm:$0x1] %v897
    // Predicated region
    $region22: #{forward.1} parent=1 // pred_check
      _
    $region23: #{forward.1} parent=1 // pred_check_branch
      %902 = sbr.rel (0) target = $region25
    $region24: #{forward.1} parent=1 // pred_region
      _
    $region25: #{forward.1} parent=1 // pred_fallthru
      _
    // Predicated region
    $region26: #{forward.1} parent=1 // pred_check
      _
    $region27: #{forward.1} parent=1 // pred_check_branch
      %904 = sbr.rel (0) target = $region29
    $region28: #{forward.1} parent=1 // pred_region
      _
    $region29: #{forward.1} parent=1 // pred_fallthru
      _
    %905 = vsyncpa [#allocation4], 1
    %906 = vsyncpa [#allocation6], 1

</llo_original>
